<compile_context>
chip_gen: v7x
topology: tpu7x:2x2x1
jax: 0.10.0
libtpu: 0.0.40
codegen_flags: <defaults>
</compile_context>

<pallas_src>
import math

import jax
import jax.numpy as jnp
from jax.experimental import pallas as pl
from jax.experimental.pallas import tpu as pltpu


# ---------------------------------------------------------------------------
# Kernels
# ---------------------------------------------------------------------------

def _basic_norm_lane_kernel(eps_ref, x_ref, o_ref):
    """Channel on the last (lane) axis. x_ref/o_ref: (tile_rows, C)."""
    eps = eps_ref[0]                                     # scalar, from SMEM
    xf = x_ref[...].astype(jnp.float32)                  # f32 accumulation
    ms = jnp.mean(xf * xf, axis=-1, keepdims=True)       # (tile_rows, 1)
    o_ref[...] = (xf * jax.lax.rsqrt(ms + eps)).astype(o_ref.dtype)


def _basic_norm_sublane_kernel(eps_ref, x_ref, o_ref):
    """Channel on the sublane axis. x_ref/o_ref: (1, C, tile_cols)."""
    eps = eps_ref[0]
    xf = x_ref[...].astype(jnp.float32)
    ms = jnp.mean(xf * xf, axis=1, keepdims=True)        # XLU sublane reduce
    o_ref[...] = (xf * jax.lax.rsqrt(ms + eps)).astype(o_ref.dtype)


# ---------------------------------------------------------------------------
# Tiling helpers
# ---------------------------------------------------------------------------

_TARGET_BLOCK_BYTES = 4 << 20      # ~MiB-scale blocks sit near the HBM roofline
_TINY_BYTES = 512 << 10            # below this, a single block is fine


def _cdiv(a, b):
    return -(-a // b)


def _round_up(a, b):
    return _cdiv(a, b) * b


def _sublane_min(dtype):
    # (8,128) f32, (16,128) bf16/f16, (32,128) int8/fp8.
    return max(8, 32 // jnp.dtype(dtype).itemsize)


def _vmem_capacity_bytes():
    try:
        return int(pltpu.get_tpu_info().vmem_capacity_bytes)
    except Exception:
        return 64 << 20            # conservative: v7x per-TensorCore VMEM


def _block_budget_bytes():
    # Pipeline holds ~2 arrays (in + out) x 2 buffers per block plus the f32
    # upcast temporaries; keep well under the VMEM capacity.
    return min(_TARGET_BLOCK_BYTES, _vmem_capacity_bytes() // 8)


def _compiler_params(block_bytes, n_grid_axes):
    cap = _vmem_capacity_bytes()
    vmem_limit = int(min(cap, max(32 << 20, 6 * block_bytes + (8 << 20))))
    return pltpu.CompilerParams(
        dimension_semantics=("parallel",) * n_grid_axes,
        vmem_limit_bytes=vmem_limit)


# ---------------------------------------------------------------------------
# Wrapper
# ---------------------------------------------------------------------------

def basic_norm(x, log_eps, channel_dim=-1):
    """Pallas implementation of _BasicNorm.forward (eval mode)."""
    nd = x.ndim
    ch = channel_dim % nd
    C = x.shape[ch]
    itemsize = jnp.dtype(x.dtype).itemsize

    # eps = exp(log_eps): computed once here, read as a scalar from SMEM.
    eps_smem = jnp.exp(jnp.asarray(log_eps, jnp.float32)).reshape(1)
    eps_spec = pl.BlockSpec(memory_space=pltpu.MemorySpace.SMEM)

    if ch == nd - 1:
        # ---- channel last: flatten rows (free reshape), reduce over lanes --
        orig_shape = x.shape
        x2 = x.reshape(-1, C)
        N = x2.shape[0]

        sub = _sublane_min(x.dtype)
        row_bytes = C * itemsize
        tile_rows = max(sub,
                        (_block_budget_bytes() // max(row_bytes, 1)) // sub * sub)
        tile_rows = min(tile_rows, _round_up(N, sub))
        if N * row_bytes > _TINY_BYTES:
            # Keep >= ~4 grid steps so writeback(i-1) overlaps fetch(i+1).
            tile_rows = min(tile_rows, max(sub, _round_up(_cdiv(N, 4), sub)))
        grid = (_cdiv(N, tile_rows),)
        block_bytes = tile_rows * row_bytes

        # NOTE: if C is not a multiple of 128 the lane occupancy of the
        # (tile_rows, C) tile is reduced (masked vst); acceptable for small C.
        out = pl.pallas_call(
            _basic_norm_lane_kernel,
            out_shape=jax.ShapeDtypeStruct((N, C), x2.dtype),
            grid=grid,
            in_specs=[
                eps_spec,
                pl.BlockSpec((tile_rows, C), lambda i: (i, 0)),
            ],
            out_specs=pl.BlockSpec((tile_rows, C), lambda i: (i, 0)),
            compiler_params=_compiler_params(block_bytes, 1),
            cost_estimate=pl.CostEstimate(
                flops=3 * N * C,
                transcendentals=N,
                bytes_accessed=2 * N * C * itemsize),
        )(eps_smem, x2)
        return out.reshape(orig_shape)

    # ---- channel NOT last: free reshape to (lead, C, trail); reduce over ---
    # the sublane axis.  No moveaxis -> no extra HBM passes.
    lead = math.prod(x.shape[:ch]) if ch > 0 else 1
    trail = math.prod(x.shape[ch + 1:])
    x3 = x.reshape(lead, C, trail)

    col_bytes = C * itemsize
    tile_cols = max(128,
                    (_block_budget_bytes() // max(col_bytes, 1)) // 128 * 128)
    if trail <= tile_cols:
        tile_cols = trail                      # full extent (any width legal)
    grid = (lead, _cdiv(trail, tile_cols))
    block_bytes = C * tile_cols * itemsize

    out = pl.pallas_call(
        _basic_norm_sublane_kernel,
        out_shape=jax.ShapeDtypeStruct((lead, C, trail), x3.dtype),
        grid=grid,
        in_specs=[
            eps_spec,
            pl.BlockSpec((1, C, tile_cols), lambda i, j: (i, 0, j)),
        ],
        out_specs=pl.BlockSpec((1, C, tile_cols), lambda i, j: (i, 0, j)),
        compiler_params=_compiler_params(block_bytes, 2),
        cost_estimate=pl.CostEstimate(
            flops=3 * lead * C * trail,
            transcendentals=lead * trail,
            bytes_accessed=2 * lead * C * trail * itemsize),
    )(eps_smem, x3)
    return out.reshape(x.shape)


def reference(x, log_eps, channel_dim=-1):
    """Pure-JAX replica of the eval-mode PyTorch forward."""
    xf = x.astype(jnp.float32)
    ms = jnp.mean(xf * xf, axis=channel_dim, keepdims=True)
    return (xf * (ms + jnp.exp(log_eps)) ** (-0.5)).astype(x.dtype)


if __name__ == "__main__":
    log_eps = jnp.log(jnp.asarray(0.25, jnp.float32))   # _BasicNorm init eps=0.25

    # Default layout: (seq, batch, channels), channel_dim=-1 (module default).
    S, B, C = 8, 2, 32
    x = jax.random.normal(jax.random.PRNGKey(0), (S, B, C), jnp.float32)
    out = jax.block_until_ready(basic_norm(x, log_eps, channel_dim=-1))
    ref = reference(x, log_eps, channel_dim=-1)
    assert out.shape == (S, B, C)
    assert jnp.allclose(out, ref, atol=1e-5, rtol=1e-5), \
        f"max abs err {jnp.max(jnp.abs(out - ref))}"

    # Non-default layout: channel axis not last -> sublane-reduce path,
    # no transposes in or out.
    x2 = jax.random.normal(jax.random.PRNGKey(1), (2, 4, 16), jnp.float32)
    out2 = jax.block_until_ready(basic_norm(x2, log_eps, channel_dim=1))
    ref2 = reference(x2, log_eps, channel_dim=1)
    assert jnp.allclose(out2, ref2, atol=1e-5, rtol=1e-5), \
        f"max abs err {jnp.max(jnp.abs(out2 - ref2))}"

    # bf16 input: f32 accumulation inside the kernel, bf16 I/O.
    xb = jax.random.normal(jax.random.PRNGKey(2), (16, 2, 128), jnp.bfloat16)
    outb = jax.block_until_ready(basic_norm(xb, log_eps, channel_dim=-1))
    refb = reference(xb, log_eps, channel_dim=-1)
    assert jnp.allclose(outb.astype(jnp.float32), refb.astype(jnp.float32),
                        atol=2e-2, rtol=2e-2)

    print("KERNEL_OK")
</pallas_src>

<mosaic_0001>
module attributes {stable_mosaic.version = 11 : i64} {
  func.func @_basic_norm_lane_kernel(%arg0: i32, %arg1: memref<1xf32, #tpu.memory_space<smem>>, %arg2: memref<16x32xf32, #tpu.memory_space<vmem>>, %arg3: memref<16x32xf32, #tpu.memory_space<vmem>>) attributes {dimension_semantics = [#tpu.dimension_semantics<parallel>], iteration_bounds = array<i64: 1>, scalar_prefetch = 0 : i64, scratch_operands = 0 : i64, tpu.core_type = #tpu.core_type<tc>, window_params = [{transform_indices = @transform_0, window_bounds = array<i64: 1>}, {transform_indices = @transform_1, window_bounds = array<i64: 16, 32>}, {transform_indices = @transform_2, window_bounds = array<i64: 16, 32>}]} {
    %c0 = arith.constant 0 : index
    %0 = memref.load %arg1[%c0] : memref<1xf32, #tpu.memory_space<smem>>
    %c0_0 = arith.constant 0 : index
    %c0_1 = arith.constant 0 : index
    %1 = vector.load %arg2[%c0_0, %c0_1] : memref<16x32xf32, #tpu.memory_space<vmem>>, vector<16x32xf32>
    %2 = arith.mulf %1, %1 : vector<16x32xf32>
    %cst = arith.constant dense<0.000000e+00> : vector<16xf32>
    %3 = vector.multi_reduction <add>, %2, %cst [1] : vector<16x32xf32> to vector<16xf32>
    %4 = vector.shape_cast %3 : vector<16xf32> to vector<16x1xf32>
    %cst_2 = arith.constant 3.200000e+01 : f32
    %5 = vector.broadcast %cst_2 : f32 to vector<16x1xf32>
    %6 = arith.divf %4, %5 : vector<16x1xf32>
    %7 = vector.broadcast %0 : f32 to vector<16x1xf32>
    %8 = arith.addf %6, %7 : vector<16x1xf32>
    %9 = math.rsqrt %8 : vector<16x1xf32>
    %10 = vector.broadcast %9 : vector<16x1xf32> to vector<16x32xf32>
    %11 = arith.mulf %1, %10 : vector<16x32xf32>
    %c0_3 = arith.constant 0 : index
    %c0_4 = arith.constant 0 : index
    %12 = vector.load %arg3[%c0_3, %c0_4] : memref<16x32xf32, #tpu.memory_space<vmem>>, vector<16x32xf32>
    tpu.vector_store %arg3[%c0_3, %c0_4], %11 {strides = array<i32>} : memref<16x32xf32, #tpu.memory_space<vmem>>, vector<16x32xf32>,
    return
  }
  func.func @transform_0(%arg0: i32) -> i32 {
    %c0_i32 = arith.constant 0 : i32
    %c0_i32_0 = arith.constant 0 : i32
    return %c0_i32 : i32
  }
  func.func @transform_1(%arg0: i32) -> (i32, i32) {
    %c0_i32 = arith.constant 0 : i32
    %c0_i32_0 = arith.constant 0 : i32
    return %arg0, %c0_i32 : i32, i32
  }
  func.func @transform_2(%arg0: i32) -> (i32, i32) {
    %c0_i32 = arith.constant 0 : i32
    %c0_i32_0 = arith.constant 0 : i32
    return %arg0, %c0_i32 : i32, i32
  }
}

</mosaic_0001>

<llo_original>
// kernel: tpu_custom_call.1
$region0: #{tpu_custom_call.1}
  #allocation0 [shape = 'u32[]', space=smem, size = 0x4, offset = 0x4, fixed_abs, tag = 'smem constant byte address 0x4 - core index']
  #allocation1 [shape = 'u32[144,128]{1,0:T(1,128)}', space=vmem, size = 0x12000, scoped, tag = 'internal scratch']
  #allocation2 [shape = 'f32[1]{0:T(128)S(6)}', space=smem, size = 0x200, scoped, tag = 'scoped memory for tpu_custom_call.1']
  %s0 = inlined_call_operand.<no memory space> [shape: f32[1], index: 0, kind: input, shape index: {}]
  %s1 = inlined_call_operand.hbm [shape: f32[16,32], index: 1, kind: input, shape index: {}]
  %s2 = inlined_call_operand.hbm [shape: f32[16,32], index: 2, kind: output, shape index: {}]
  %s3 = sld [smem:[#allocation0]]
  $region22: #{tpu_custom_call.1} parent=0
    _
  %s5 = ssub.s32 1, %s3
  %s6 = scalar_select 0, %s5, %s3
  %7 = sst [smem:[#allocation2]] %s0
  $region1: #{tpu_custom_call.1} parent=0
    #allocation3 [shape = 'u8[8192]{0}', space=vmem, size = 0x2000, scoped, tag = 'input window, operand 1, single buffered']
    #allocation4 [shape = 's32[1]{0}', space=sflag, size = 0x4, scoped, tag = 'scoped memory for tpu_custom_call.1']
    #allocation5 [shape = 's32[1]{0}', space=sflag, size = 0x4, scoped, tag = 'scoped memory for tpu_custom_call.1']
    #allocation6 [shape = 'u8[8192]{0}', space=vmem, size = 0x2000, scoped, tag = 'output window, operand 0, single buffered']
    %8 = vsyncpa [#allocation4], 0
    %9 = vsyncpa [#allocation5], 0
    // Predicated region
    $region2: #{tpu_custom_call.1} parent=1 // pred_check
      _
    $region3: #{tpu_custom_call.1} parent=1 // pred_check_branch
      %11 = sbr.rel (0) target = $region5
    $region4: #{tpu_custom_call.1} parent=1 // pred_region
      _
    $region5: #{tpu_custom_call.1} parent=1 // pred_fallthru
      _
    // Predicated region
    $region6: #{tpu_custom_call.1} parent=1 // pred_check
      _
    $region7: #{tpu_custom_call.1} parent=1 // pred_check_branch
      %13 = sbr.rel (0) target = $region9
    $region8: #{tpu_custom_call.1} parent=1 // pred_region
      %s15 = ssub.s32 256, 256
      %16 = vsyncadd [#allocation4], %s15
      %s17 = sshll.u32 [#allocation3], 4
      %s18 = int_to_ptr.vmem [resolvable:$true] %s17
      %23 = dma.hbm_to_vmem [thread:$0]  %s1, 256, %s18, [#allocation4], 128, 128, 8
    $region9: #{tpu_custom_call.1} parent=1 // pred_fallthru
      _
    // Predicated region
    $region10: #{tpu_custom_call.1} parent=1 // pred_check
      _
    $region11: #{tpu_custom_call.1} parent=1 // pred_check_branch
      %25 = sbr.rel (0) target = $region13
    $region12: #{tpu_custom_call.1} parent=1 // pred_region
      %26 = dma.done [#allocation4], 256
    $region13: #{tpu_custom_call.1} parent=1 // pred_fallthru
      _
    %s27 = sld [smem:[#allocation2]]
    %v28 = vld [vmem:[#allocation3] sm:$0xff]
    %v29 = vld [vmem:[#allocation3 + $0x8] sm:$0xff]
    %v30 = vmul.f32 %v28, %v28
    %v31 = vmul.f32 %v29, %v29
    %vm32 = vcmask 261120
    %v33 = vsel %vm32, %v30, 0.0
    %34 = vadd.xlane.f32.xlu0 %v33
    %v35 = vpop.xlane.xlu0 %34
    %v36 = vsel %vm32, %v31, 0.0
    %37 = vadd.xlane.f32.xlu0 %v36
    %v38 = vpop.xlane.xlu0 %37
    %v39 = vrcp.pop 32.0
    %v40 = vmul.f32 %v35, %v39
    %v41 = vmul.f32 %v38, %v39
    %v42 = vstv %s27
    %v43 = vadd.f32 %v40, %v42
    %v44 = vadd.f32 %v41, %v42
    %v45 = vrsqrt.pop %v43
    %v46 = vrsqrt.pop %v44
    %v47 = vmul.f32 %v28, %v45
    %v48 = vmul.f32 %v29, %v46
    %49 = vst.msk [vmem:[#allocation6] sm:$0xff] %vm32, %v47
    %50 = vst.msk [vmem:[#allocation6 + $0x8] sm:$0xff] %vm32, %v48
    // Predicated region
    $region14: #{tpu_custom_call.1} parent=1 // pred_check
      _
    $region15: #{tpu_custom_call.1} parent=1 // pred_check_branch
      %52 = sbr.rel (0) target = $region17
    $region16: #{tpu_custom_call.1} parent=1 // pred_region
      %s54 = ssub.s32 256, 256
      %55 = vsyncadd [#allocation5], %s54
      %s56 = sshll.u32 [#allocation6], 4
      %s57 = int_to_ptr.vmem [resolvable:$true] %s56
      %62 = dma.vmem_to_hbm [thread:$0]  %s57, 256, %s2, [#allocation5], 128, 128, 8
    $region17: #{tpu_custom_call.1} parent=1 // pred_fallthru
      _
    // Predicated region
    $region18: #{tpu_custom_call.1} parent=1 // pred_check
      _
    $region19: #{tpu_custom_call.1} parent=1 // pred_check_branch
      %64 = sbr.rel (0) target = $region21
    $region20: #{tpu_custom_call.1} parent=1 // pred_region
      %65 = dma.done [#allocation5], 256
    $region21: #{tpu_custom_call.1} parent=1 // pred_fallthru
      _
    %66 = vsyncpa [#allocation4], 1
    %67 = vsyncpa [#allocation5], 1

</llo_original>
